<compile_context>
chip_gen: v5e
topology: v5e:2x2
jax: 0.10.0
libtpu: 0.0.40
codegen_flags: <defaults>
</compile_context>

<pallas_src>
import functools

import jax
import jax.numpy as jnp
from jax.experimental import pallas as pl
from jax.experimental.pallas import tpu as pltpu

EPS = 1e-5
CHUNK = 8                  # sublane-aligned rows per DMA chunk (fallback path)
ONEHOT_MAX_VOCAB = 4096    # one-hot MXU gather only while its flop cost is trivial
SEQ_TILE_MAX = 256         # rows of (gather + pos + LN) work per grid step


def _round_up(x: int, m: int) -> int:
    return (x + m - 1) // m * m


def _vmem_capacity_bytes() -> int:
    """Physical VMEM of this generation (conservative default = v7x's 64 MiB)."""
    try:
        return int(pltpu.get_tpu_info().vmem_capacity_bytes)
    except Exception:
        return 64 * 1024 * 1024


def _layer_norm(z, gamma, beta):
    mean = jnp.mean(z, axis=-1, keepdims=True)
    c = z - mean
    var = jnp.mean(c * c, axis=-1, keepdims=True)
    return c * jax.lax.rsqrt(var + EPS) * gamma + beta


# ---------------------------------------------------------------------------
# Path A: VMEM-resident table, one-hot MXU gather (no per-row DMAs).
# ---------------------------------------------------------------------------
def _embed_resident_kernel(ids_ref,    # VMEM (seq_tile, 1) int32
                           word_ref,   # VMEM (V, H) table dtype (resident, const index)
                           pos_ref,    # VMEM (seq_tile, H)
                           gamma_ref,  # VMEM (1, H) f32
                           beta_ref,   # VMEM (1, H) f32
                           out_ref):   # VMEM (seq_tile, H) f32
    seq_tile = ids_ref.shape[0]
    vocab = word_ref.shape[0]

    ids = ids_ref[...]                                                 # (seq_tile, 1)
    lanes = jax.lax.broadcasted_iota(jnp.int32, (seq_tile, vocab), 1)
    onehot = (ids == lanes).astype(word_ref.dtype)                     # (seq_tile, V)
    # Row gather rides the otherwise-idle MXU; HIGHEST precision keeps the
    # selected f32 table values (numerically) exact.
    tok = jnp.dot(onehot, word_ref[...],
                  preferred_element_type=jnp.float32,
                  precision=jax.lax.Precision.HIGHEST)                 # (seq_tile, H) f32

    z = tok + pos_ref[...].astype(jnp.float32)
    out_ref[...] = _layer_norm(z, gamma_ref[...], beta_ref[...]).astype(out_ref.dtype)
    # TODO(synk): dropout(p=0.1) omitted (eval-mode identity).


# ---------------------------------------------------------------------------
# Path B: HBM table, chunked + double-buffered DMA gather overlapped with LN.
# ---------------------------------------------------------------------------
def _embed_hbm_kernel(seq_tile, n_chunks,
                      ids_ref,     # SMEM (B*S_pad,) int32 (scalar prefetch, flat)
                      word_hbm,    # HBM  (V, H) table dtype (memory_space=pl.ANY)
                      pos_ref,     # VMEM (seq_tile, H)
                      gamma_ref,   # VMEM (1, H) f32
                      beta_ref,    # VMEM (1, H) f32
                      out_ref,     # VMEM (seq_tile, H) f32
                      tok_buf,     # VMEM (2, CHUNK, H) table dtype (double buffer)
                      sems):       # DMA semaphores (2, CHUNK)
    t = pl.program_id(0)
    b = pl.program_id(1)
    n_seq = pl.num_programs(0)
    base = b * (n_seq * seq_tile) + t * seq_tile

    def start_chunk(c, slot):
        # All SMEM id reads are issued before any .wait() (keeps sst->sld forwarding).
        for i in range(CHUNK):                       # static unroll
            rid = ids_ref[base + c * CHUNK + i]
            pltpu.make_async_copy(word_hbm.at[pl.ds(rid, 1)],
                                  tok_buf.at[slot, pl.ds(i, 1)],
                                  sems.at[slot, i]).start()

    def wait_chunk(slot):
        for i in range(CHUNK):
            pltpu.make_async_copy(word_hbm.at[pl.ds(0, 1)],
                                  tok_buf.at[slot, pl.ds(i, 1)],
                                  sems.at[slot, i]).wait()

    gamma = gamma_ref[...]        # hoisted out of the chunk loop (v5e store/VPU note)
    beta = beta_ref[...]

    start_chunk(0, 0)
    for c in range(n_chunks):     # static unroll: n_chunks = seq_tile // CHUNK <= 32
        slot = c & 1
        if c + 1 < n_chunks:      # prefetch next chunk BEFORE waiting on this one
            start_chunk(c + 1, 1 - slot)
        wait_chunk(slot)
        rows = pl.ds(c * CHUNK, CHUNK)
        z = tok_buf[slot].astype(jnp.float32) + pos_ref[rows, :].astype(jnp.float32)
        out_ref[rows, :] = _layer_norm(z, gamma, beta).astype(out_ref.dtype)
    # TODO(synk): dropout(p=0.1) omitted (eval-mode identity).


# ---------------------------------------------------------------------------
# Wrapper
# ---------------------------------------------------------------------------
def embedding_forward(input_ids, word_table, pos_table, gamma, beta,
                      *, seq_tile_max=SEQ_TILE_MAX, force_hbm_gather=False):
    """LayerNorm(word_emb[input_ids] + pos_emb[:S]) — the PyTorch module in eval mode."""
    B, S = input_ids.shape
    V, H = word_table.shape
    max_len = pos_table.shape[0]
    assert S <= max_len, "sequence longer than max_len"

    # --- tiling: sublane-multiple seq tile, zero-pad ragged tails ---
    seq_tile = min(_round_up(seq_tile_max, 8), _round_up(S, 8))
    s_pad = _round_up(S, seq_tile)
    n_seq = s_pad // seq_tile

    ids = jnp.clip(input_ids.astype(jnp.int32), 0, V - 1)   # never gather out-of-range
    if s_pad != S:
        ids = jnp.pad(ids, ((0, 0), (0, s_pad - S)))
    pos = pos_table[:S]                                      # native dtype, no f32 copy
    if s_pad != S:
        pos = jnp.pad(pos, ((0, s_pad - S), (0, 0)))

    gamma2 = gamma.reshape(1, H).astype(jnp.float32)
    beta2 = beta.reshape(1, H).astype(jnp.float32)

    # --- per-generation VMEM budgeting for the resident-table fast path ---
    vmem_cap = _vmem_capacity_bytes()            # ~64 MiB on v7x, 128 MiB on v5e/v6e
    table_bytes = V * H * word_table.dtype.itemsize
    block_bytes = 2 * (2 * seq_tile * H * 4)     # double-buffered pos + out blocks (f32)
    resident_need = 2 * table_bytes + block_bytes + (4 << 20)   # 2x: pipeline buffers
    use_resident = ((not force_hbm_gather)
                    and V <= ONEHOT_MAX_VOCAB
                    and resident_need <= int(vmem_cap * 0.7))

    # grid = (seq_tiles, batch): pos block index depends only on the outer axis,
    # so Pallas fetches each positional tile once (not B times).
    grid = (n_seq, B)
    out_shape = jax.ShapeDtypeStruct((B, s_pad, H), jnp.float32)
    out_spec = pl.BlockSpec((None, seq_tile, H), lambda t, b, *_: (b, t, 0))
    pos_spec = pl.BlockSpec((seq_tile, H), lambda t, b, *_: (t, 0))
    g_spec = pl.BlockSpec((1, H), lambda t, b, *_: (0, 0))

    if use_resident:
        vmem_limit = int(min(vmem_cap - (4 << 20), max(resident_need, 16 << 20)))
        ids_col = ids.reshape(B * s_pad, 1)      # (rows, 1): sublane-major id column
        out = pl.pallas_call(
            _embed_resident_kernel,
            out_shape=out_shape,
            grid_spec=pltpu.PrefetchScalarGridSpec(
                num_scalar_prefetch=0,
                grid=grid,
                in_specs=[
                    pl.BlockSpec((seq_tile, 1), lambda t, b: (b * n_seq + t, 0)),
                    pl.BlockSpec((V, H), lambda t, b: (0, 0)),   # resident table
                    pos_spec, g_spec, g_spec,
                ],
                out_specs=out_spec,
            ),
            compiler_params=pltpu.CompilerParams(
                dimension_semantics=("parallel", "parallel"),
                vmem_limit_bytes=vmem_limit),
        )(ids_col, word_table, pos, gamma2, beta2)
    else:
        n_chunks = seq_tile // CHUNK
        fallback_need = block_bytes + 2 * CHUNK * H * word_table.dtype.itemsize + (4 << 20)
        vmem_limit = int(min(vmem_cap - (4 << 20), max(fallback_need, 16 << 20)))
        kernel = functools.partial(_embed_hbm_kernel, seq_tile, n_chunks)
        out = pl.pallas_call(
            kernel,
            out_shape=out_shape,
            grid_spec=pltpu.PrefetchScalarGridSpec(
                num_scalar_prefetch=1,                    # flat 1-D ids -> SMEM
                grid=grid,
                in_specs=[
                    pl.BlockSpec(memory_space=pl.ANY),    # table stays in HBM
                    pos_spec, g_spec, g_spec,
                ],
                out_specs=out_spec,
                scratch_shapes=[
                    pltpu.VMEM((2, CHUNK, H), word_table.dtype),
                    pltpu.SemaphoreType.DMA((2, CHUNK)),
                ]),
            compiler_params=pltpu.CompilerParams(
                dimension_semantics=("parallel", "parallel"),
                vmem_limit_bytes=vmem_limit),
        )(ids.reshape(-1), word_table, pos, gamma2, beta2)

    return out if s_pad == S else out[:, :S, :]


# ---------------------------------------------------------------------------
# main
# ---------------------------------------------------------------------------
if __name__ == "__main__":
    B, S = 2, 16
    vocab, hidden, max_len = 64, 128, 32      # hidden = 128 -> lane-dense output stores

    key = jax.random.PRNGKey(0)
    k_ids, k_word, k_pos = jax.random.split(key, 3)

    input_ids = jax.random.randint(k_ids, (B, S), 0, vocab, dtype=jnp.int32)
    word_table = jax.random.normal(k_word, (vocab, hidden), jnp.float32)  # nn.Embedding ~ N(0,1)
    pos_table = jax.random.normal(k_pos, (max_len, hidden), jnp.float32)
    gamma = jnp.ones((hidden,), jnp.float32)                              # nn.LayerNorm defaults
    beta = jnp.zeros((hidden,), jnp.float32)

    def reference(ids, s):
        tok = jnp.take(word_table, ids, axis=0)
        emb = tok + pos_table[:s][None, :, :]
        mean = jnp.mean(emb, axis=-1, keepdims=True)
        var = jnp.mean((emb - mean) ** 2, axis=-1, keepdims=True)
        return (emb - mean) * jax.lax.rsqrt(var + EPS) * gamma + beta

    # 1) fast path: table resident in VMEM, one-hot MXU gather (default for this size)
    out_fast = jax.block_until_ready(
        embedding_forward(input_ids, word_table, pos_table, gamma, beta))
    ref = reference(input_ids, S)
    assert out_fast.shape == (B, S, hidden)
    assert bool(jnp.all(jnp.isfinite(out_fast)))
    assert bool(jnp.allclose(out_fast, ref, atol=1e-4, rtol=1e-4))

    # 2) fallback path: HBM DMA gather, chunked + double-buffered (forced)
    out_dma = jax.block_until_ready(
        embedding_forward(input_ids, word_table, pos_table, gamma, beta,
                          force_hbm_gather=True))
    assert bool(jnp.allclose(out_dma, ref, atol=1e-4, rtol=1e-4))

    # 3) ragged sequence length (padded to a sublane multiple, sliced off)
    s_ragged = 13
    ids_ragged = input_ids[:, :s_ragged]
    out_ragged = jax.block_until_ready(
        embedding_forward(ids_ragged, word_table, pos_table, gamma, beta))
    assert out_ragged.shape == (B, s_ragged, hidden)
    assert bool(jnp.allclose(out_ragged, reference(ids_ragged, s_ragged),
                             atol=1e-4, rtol=1e-4))

    print("KERNEL_OK")
</pallas_src>

<mosaic_0001>
module attributes {stable_mosaic.version = 11 : i64} {
  func.func @_embed_resident_kernel(%arg0: i32, %arg1: i32, %arg2: memref<16x1xi32, #tpu.memory_space<vmem>>, %arg3: memref<64x128xf32, #tpu.memory_space<vmem>>, %arg4: memref<16x128xf32, #tpu.memory_space<vmem>>, %arg5: memref<1x128xf32, #tpu.memory_space<vmem>>, %arg6: memref<1x128xf32, #tpu.memory_space<vmem>>, %arg7: memref<1x16x128xf32, #tpu.memory_space<vmem>>) attributes {dimension_semantics = [#tpu.dimension_semantics<parallel>, #tpu.dimension_semantics<parallel>], iteration_bounds = array<i64: 1, 2>, scalar_prefetch = 0 : i64, scratch_operands = 0 : i64, tpu.core_type = #tpu.core_type<tc>, window_params = [{transform_indices = @transform_0, window_bounds = array<i64: 16, 1>}, {pipeline_mode = #tpu.pipeline_mode<synchronous>, transform_indices = @transform_1, window_bounds = array<i64: 64, 128>}, {transform_indices = @transform_2, window_bounds = array<i64: 16, 128>}, {pipeline_mode = #tpu.pipeline_mode<synchronous>, transform_indices = @transform_3, window_bounds = array<i64: 1, 128>}, {pipeline_mode = #tpu.pipeline_mode<synchronous>, transform_indices = @transform_4, window_bounds = array<i64: 1, 128>}, {transform_indices = @transform_5, window_bounds = array<i64: 1, 16, 128>}]} {
    %c0 = arith.constant 0 : index
    %c0_0 = arith.constant 0 : index
    %0 = vector.load %arg2[%c0, %c0_0] : memref<16x1xi32, #tpu.memory_space<vmem>>, vector<16x1xi32>
    %1 = tpu.iota {dimensions = array<i32: 1>} : vector<16x64xi32>
    %2 = vector.broadcast %0 : vector<16x1xi32> to vector<16x64xi32>
    %3 = arith.cmpi eq, %2, %1 : vector<16x64xi32>
    %4 = arith.extui %3 : vector<16x64xi1> to vector<16x64xi32>
    %5 = arith.sitofp %4 : vector<16x64xi32> to vector<16x64xf32>
    %c0_1 = arith.constant 0 : index
    %c0_2 = arith.constant 0 : index
    %6 = vector.load %arg3[%c0_1, %c0_2] : memref<64x128xf32, #tpu.memory_space<vmem>>, vector<64x128xf32>
    %cst = arith.constant dense<0.000000e+00> : vector<16x128xf32>
    %7 = tpu.matmul %5, %6, %cst {dimension_numbers = #tpu.dot_dimension_numbers<[1], [0], [0], [1], [0, 0, 1, 1], [], []>, precision = #tpu.contract_precision<fp32>} : vector<16x64xf32>, vector<64x128xf32>, vector<16x128xf32> -> vector<16x128xf32>
    %c0_3 = arith.constant 0 : index
    %c0_4 = arith.constant 0 : index
    %8 = vector.load %arg4[%c0_3, %c0_4] : memref<16x128xf32, #tpu.memory_space<vmem>>, vector<16x128xf32>
    %9 = arith.addf %7, %8 : vector<16x128xf32>
    %c0_5 = arith.constant 0 : index
    %c0_6 = arith.constant 0 : index
    %10 = vector.load %arg5[%c0_5, %c0_6] : memref<1x128xf32, #tpu.memory_space<vmem>>, vector<1x128xf32>
    %c0_7 = arith.constant 0 : index
    %c0_8 = arith.constant 0 : index
    %11 = vector.load %arg6[%c0_7, %c0_8] : memref<1x128xf32, #tpu.memory_space<vmem>>, vector<1x128xf32>
    %cst_9 = arith.constant dense<0.000000e+00> : vector<16xf32>
    %12 = vector.multi_reduction <add>, %9, %cst_9 [1] : vector<16x128xf32> to vector<16xf32>
    %13 = vector.shape_cast %12 : vector<16xf32> to vector<16x1xf32>
    %cst_10 = arith.constant 1.280000e+02 : f32
    %14 = vector.broadcast %cst_10 : f32 to vector<16x1xf32>
    %15 = arith.divf %13, %14 : vector<16x1xf32>
    %16 = vector.broadcast %15 : vector<16x1xf32> to vector<16x128xf32>
    %17 = arith.subf %9, %16 : vector<16x128xf32>
    %18 = arith.mulf %17, %17 : vector<16x128xf32>
    %cst_11 = arith.constant dense<0.000000e+00> : vector<16xf32>
    %19 = vector.multi_reduction <add>, %18, %cst_11 [1] : vector<16x128xf32> to vector<16xf32>
    %20 = vector.shape_cast %19 : vector<16xf32> to vector<16x1xf32>
    %cst_12 = arith.constant 1.280000e+02 : f32
    %21 = vector.broadcast %cst_12 : f32 to vector<16x1xf32>
    %22 = arith.divf %20, %21 : vector<16x1xf32>
    %cst_13 = arith.constant 9.99999974E-6 : f32
    %23 = vector.broadcast %cst_13 : f32 to vector<16x1xf32>
    %24 = arith.addf %22, %23 : vector<16x1xf32>
    %25 = math.rsqrt %24 : vector<16x1xf32>
    %26 = vector.broadcast %25 : vector<16x1xf32> to vector<16x128xf32>
    %27 = arith.mulf %17, %26 : vector<16x128xf32>
    %28 = vector.broadcast %10 : vector<1x128xf32> to vector<16x128xf32>
    %29 = arith.mulf %27, %28 : vector<16x128xf32>
    %30 = vector.broadcast %11 : vector<1x128xf32> to vector<16x128xf32>
    %31 = arith.addf %29, %30 : vector<16x128xf32>
    %c0_14 = arith.constant 0 : index
    %c0_15 = arith.constant 0 : index
    %c0_16 = arith.constant 0 : index
    %32 = vector.load %arg7[%c0_14, %c0_15, %c0_16] : memref<1x16x128xf32, #tpu.memory_space<vmem>>, vector<1x16x128xf32>
    %33 = vector.shape_cast %32 : vector<1x16x128xf32> to vector<16x128xf32>
    %34 = vector.shape_cast %31 : vector<16x128xf32> to vector<1x16x128xf32>
    tpu.vector_store %arg7[%c0_14, %c0_15, %c0_16], %34 {strides = array<i32>} : memref<1x16x128xf32, #tpu.memory_space<vmem>>, vector<1x16x128xf32>,
    return
  }
  func.func @transform_0(%arg0: i32, %arg1: i32) -> (i32, i32) {
    %c1_i32 = arith.constant 1 : i32
    %0 = arith.muli %arg1, %c1_i32 : i32
    %1 = arith.addi %0, %arg0 : i32
    %c0_i32 = arith.constant 0 : i32
    %c0_i32_0 = arith.constant 0 : i32
    return %1, %c0_i32 : i32, i32
  }
  func.func @transform_1(%arg0: i32, %arg1: i32) -> (i32, i32) {
    %c0_i32 = arith.constant 0 : i32
    %c0_i32_0 = arith.constant 0 : i32
    %c0_i32_1 = arith.constant 0 : i32
    return %c0_i32, %c0_i32_0 : i32, i32
  }
  func.func @transform_2(%arg0: i32, %arg1: i32) -> (i32, i32) {
    %c0_i32 = arith.constant 0 : i32
    %c0_i32_0 = arith.constant 0 : i32
    return %arg0, %c0_i32 : i32, i32
  }
  func.func @transform_3(%arg0: i32, %arg1: i32) -> (i32, i32) {
    %c0_i32 = arith.constant 0 : i32
    %c0_i32_0 = arith.constant 0 : i32
    %c0_i32_1 = arith.constant 0 : i32
    return %c0_i32, %c0_i32_0 : i32, i32
  }
  func.func @transform_4(%arg0: i32, %arg1: i32) -> (i32, i32) {
    %c0_i32 = arith.constant 0 : i32
    %c0_i32_0 = arith.constant 0 : i32
    %c0_i32_1 = arith.constant 0 : i32
    return %c0_i32, %c0_i32_0 : i32, i32
  }
  func.func @transform_5(%arg0: i32, %arg1: i32) -> (i32, i32, i32) {
    %c0_i32 = arith.constant 0 : i32
    %c0_i32_0 = arith.constant 0 : i32
    return %arg1, %arg0, %c0_i32 : i32, i32, i32
  }
}

</mosaic_0001>

<llo_original>
// kernel: tpu_custom_call.1
$region0: #{tpu_custom_call.1}
  #allocation0 [shape = 'u32[]', space=smem, size = 0x4, offset = 0x4, fixed_abs, tag = 'smem constant byte address 0x4 - core index']
  #allocation1 [shape = 'u32[72,128]{1,0:T(1,128)}', space=vmem, size = 0x9000, scoped, tag = 'internal scratch']
  %s0 = inlined_call_operand.vmem [shape: s32[32,1], index: 0, kind: input, shape index: {}]
  %s1 = inlined_call_operand.hbm [shape: f32[64,128], index: 1, kind: input, shape index: {}]
  %s2 = inlined_call_operand.vmem [shape: f32[16,128], index: 2, kind: input, shape index: {}]
  %s3 = inlined_call_operand.vmem [shape: f32[1,128], index: 3, kind: input, shape index: {}]
  %s4 = inlined_call_operand.vmem [shape: f32[1,128], index: 4, kind: input, shape index: {}]
  %s5 = inlined_call_operand.hbm [shape: f32[2,16,128], index: 5, kind: output, shape index: {}]
  %s6 = sld [smem:[#allocation0]]
  $region57: #{tpu_custom_call.1} parent=0
    _
  %s8 = ssub.s32 1, %s6
  %s9 = scalar_select 0, %s8, %s6
  $region1: #{tpu_custom_call.1} parent=0
    #allocation2 [shape = 'u8[32768]{0}', space=vmem, size = 0x8000, scoped, tag = 'input window, operand 1, single buffered']
    #allocation3 [shape = 's32[2]{0}', space=sflag, size = 0x8, scoped, tag = 'scoped memory for tpu_custom_call.1']
    #allocation4 [shape = 's32[2]{0}', space=sflag, size = 0x8, scoped, tag = 'scoped memory for tpu_custom_call.1']
    #allocation5 [shape = 'u8[16384]{0}', space=vmem, size = 0x4000, scoped, tag = 'output window, operand 0']
    %10 = vsyncpa [#allocation3], 0
    %11 = vsyncpa [#allocation4], 0
    %s12 = scalar_lea.sflag [#allocation4], 1
    %13 = vsyncpa %s12, 0
    loop: start=0, step=1, limit=4
    $region2: #{tpu_custom_call.1} parent=1 // loop_pre_header
      _
    $region3: #{tpu_custom_call.1} parent=1 // loop_header
      %s15 = sphi 0, %s19
      %p16 = scmp.ge.s32.totalorder %s15, 4
      %s22 = sphi 0, %s34
      %s23 = sphi 0, %s30
      %s24 = sphi 0, %s22
      %s25 = sphi 0, %s23
      %s26 = sphi 0, %s24
      %s27 = sphi 0, %s25
      %s39 = sphi 0, %s41
      %s42 = sphi 0, %s39
      %s43 = sphi 0, %s42
      %s59 = sphi 0, %s43
      %s63 = sphi 0, %s63
      %s65 = sphi 0, %s63
      %s66 = sphi 0, %s65
      %s80 = sphi 0, %s66
      %s86 = sphi 0, %s88
      %s89 = sphi 0, %s86
      %s90 = sphi 0, %s89
      %s106 = sphi 0, %s90
      %s110 = sphi 0, %s110
      %s112 = sphi 0, %s110
      %s113 = sphi 0, %s112
      %s127 = sphi 0, %s113
      %s131 = sphi 0, %s131
      %s133 = sphi 0, %s131
      %s134 = sphi 0, %s133
      %s148 = sphi 0, %s134
      %s156 = sphi 0, %s158
      %s159 = sphi 0, %s156
      %s160 = sphi 0, %s159
      %s176 = sphi 0, %s160
    $region4: #{tpu_custom_call.1} parent=1 // loop_header_branch
      %18 = sbr.rel (%p16) target = $region8
    $region5: #{tpu_custom_call.1} parent=1 // loop_body
      %s20 = ssub.s32 %s15, 1
      %s21 = ssub.s32 %s15, 2
      %s28 = sadd.s32 1, %s23
      %p29 = scmp.ge.s32.totalorder %s28, 2
      %s30 = scalar_select %p29, 0, %s28
      %s31 = sadd.s32 1, %s22
      %s32 = scalar_select %p29, %s31, %s22
      %p33 = scmp.ge.s32.totalorder %s32, 1
      %s34 = scalar_select %p33, 0, %s32
      %s35 = sadd.s32 %s23, %s22
      %s36 = sadd.s32 %s30, %s34
      %s37 = ssub.s32 %s35, %s36
      %p38 = scmp.eq.s32.totalorder %s37, 0
      %s40 = sadd.s32 %s39, 1
      %s41 = scalar_select %p38, %s39, %s40
      %p44 = pneg %p38
      %p45 = scmp.eq.s32.totalorder %s15, 1
      %p46 = por %p44, %p45
      %p47 = scmp.ne.s32.totalorder %s39, %s42
      %p48 = scmp.eq.s32.totalorder %s15, 0
      %p49 = por %p47, %p48
      %p50 = scmp.ne.s32.totalorder %s39, %s42
      %p51 = scmp.eq.s32.totalorder %s20, 1
      %p52 = por %p50, %p51
      %p53 = scmp.ne.s32.totalorder %s42, %s43
      %p54 = scmp.eq.s32.totalorder %s20, 0
      %p55 = por %p53, %p54
      %p56 = scmp.ne.s32.totalorder %s42, %s43
      %p57 = scmp.eq.s32.totalorder %s21, 1
      %p58 = por %p56, %p57
      %p60 = scmp.ne.s32.totalorder %s43, %s59
      %p61 = scmp.eq.s32.totalorder %s21, 0
      %p62 = por %p60, %p61
      %s64 = sadd.s32 %s63, 1
      %p67 = scmp.eq.s32.totalorder %s15, 1
      %p68 = scmp.ne.s32.totalorder %s63, %s65
      %p69 = scmp.eq.s32.totalorder %s15, 0
      %p70 = por %p68, %p69
      %p71 = scmp.ne.s32.totalorder %s63, %s65
      %p72 = scmp.eq.s32.totalorder %s20, 1
      %p73 = por %p71, %p72
      %p74 = scmp.ne.s32.totalorder %s65, %s66
      %p75 = scmp.eq.s32.totalorder %s20, 0
      %p76 = por %p74, %p75
      %p77 = scmp.ne.s32.totalorder %s65, %s66
      %p78 = scmp.eq.s32.totalorder %s21, 1
      %p79 = por %p77, %p78
      %p81 = scmp.ne.s32.totalorder %s66, %s80
      %p82 = scmp.eq.s32.totalorder %s21, 0
      %p83 = por %p81, %p82
      %s84 = ssub.s32 %s22, %s34
      %p85 = scmp.eq.s32.totalorder %s84, 0
      %s87 = sadd.s32 %s86, 1
      %s88 = scalar_select %p85, %s86, %s87
      %p91 = pneg %p85
      %p92 = scmp.eq.s32.totalorder %s15, 1
      %p93 = por %p91, %p92
      %p94 = scmp.ne.s32.totalorder %s86, %s89
      %p95 = scmp.eq.s32.totalorder %s15, 0
      %p96 = por %p94, %p95
      %p97 = scmp.ne.s32.totalorder %s86, %s89
      %p98 = scmp.eq.s32.totalorder %s20, 1
      %p99 = por %p97, %p98
      %p100 = scmp.ne.s32.totalorder %s89, %s90
      %p101 = scmp.eq.s32.totalorder %s20, 0
      %p102 = por %p100, %p101
      %p103 = scmp.ne.s32.totalorder %s89, %s90
      %p104 = scmp.eq.s32.totalorder %s21, 1
      %p105 = por %p103, %p104
      %p107 = scmp.ne.s32.totalorder %s90, %s106
      %p108 = scmp.eq.s32.totalorder %s21, 0
      %p109 = por %p107, %p108
      %s111 = sadd.s32 %s110, 1
      %p114 = scmp.eq.s32.totalorder %s15, 1
      %p115 = scmp.ne.s32.totalorder %s110, %s112
      %p116 = scmp.eq.s32.totalorder %s15, 0
      %p117 = por %p115, %p116
      %p118 = scmp.ne.s32.totalorder %s110, %s112
      %p119 = scmp.eq.s32.totalorder %s20, 1
      %p120 = por %p118, %p119
      %p121 = scmp.ne.s32.totalorder %s112, %s113
      %p122 = scmp.eq.s32.totalorder %s20, 0
      %p123 = por %p121, %p122
      %p124 = scmp.ne.s32.totalorder %s112, %s113
      %p125 = scmp.eq.s32.totalorder %s21, 1
      %p126 = por %p124, %p125
      %p128 = scmp.ne.s32.totalorder %s113, %s127
      %p129 = scmp.eq.s32.totalorder %s21, 0
      %p130 = por %p128, %p129
      %s132 = sadd.s32 %s131, 1
      %p135 = scmp.eq.s32.totalorder %s15, 1
      %p136 = scmp.ne.s32.totalorder %s131, %s133
      %p137 = scmp.eq.s32.totalorder %s15, 0
      %p138 = por %p136, %p137
      %p139 = scmp.ne.s32.totalorder %s131, %s133
      %p140 = scmp.eq.s32.totalorder %s20, 1
      %p141 = por %p139, %p140
      %p142 = scmp.ne.s32.totalorder %s133, %s134
      %p143 = scmp.eq.s32.totalorder %s20, 0
      %p144 = por %p142, %p143
      %p145 = scmp.ne.s32.totalorder %s133, %s134
      %p146 = scmp.eq.s32.totalorder %s21, 1
      %p147 = por %p145, %p146
      %p149 = scmp.ne.s32.totalorder %s134, %s148
      %p150 = scmp.eq.s32.totalorder %s21, 0
      %p151 = por %p149, %p150
      %s152 = ssub.s32 %s23, %s30
      %s153 = ssub.s32 %s22, %s34
      %s154 = sor.u32 %s152, %s153
      %p155 = scmp.eq.s32.totalorder %s154, 0
      %s157 = sadd.s32 %s156, 1
      %s158 = scalar_select %p155, %s156, %s157
      %p161 = pneg %p155
      %p162 = scmp.eq.s32.totalorder %s15, 1
      %p163 = por %p161, %p162
      %p164 = scmp.ne.s32.totalorder %s156, %s159
      %p165 = scmp.eq.s32.totalorder %s15, 0
      %p166 = por %p164, %p165
      %p167 = scmp.ne.s32.totalorder %s156, %s159
      %p168 = scmp.eq.s32.totalorder %s20, 1
      %p169 = por %p167, %p168
      %p170 = scmp.ne.s32.totalorder %s159, %s160
      %p171 = scmp.eq.s32.totalorder %s20, 0
      %p172 = por %p170, %p171
      %p173 = scmp.ne.s32.totalorder %s159, %s160
      %p174 = scmp.eq.s32.totalorder %s21, 1
      %p175 = por %p173, %p174
      %p177 = scmp.ne.s32.totalorder %s160, %s176
      %p178 = scmp.eq.s32.totalorder %s21, 0
      %p179 = por %p177, %p178
      %p180 = scmp.le.s32.totalorder 1, %s15
      %p181 = scmp.lt.s32.totalorder %s15, 3
      %p182 = pnand %p180, %p181
      %p183 = pneg %p182
      // Predicated region
      $region9: #{tpu_custom_call.1} parent=5 // pred_check
        _
      $region10: #{tpu_custom_call.1} parent=5 // pred_check_branch
        %185 = sbr.rel (%p182) target = $region12
      $region11: #{tpu_custom_call.1} parent=5 // pred_region
        %s186 = ssub.s32 %s15, 1
        // Predicated region
        $region13: #{tpu_custom_call.1} parent=11 // pred_check
          %p187 = pneg %p76
        $region14: #{tpu_custom_call.1} parent=11 // pred_check_branch
          %189 = sbr.rel (%p187) target = $region16
        $region15: #{tpu_custom_call.1} parent=11 // pred_region
          %191 = vsyncadd [#allocation3], 0
          %s192 = sshll.u32 %s1, 4
          %s193 = int_to_ptr.hbm [resolvable:$true] %s192
          %s194 = sshll.u32 [#allocation2], 4
          %s195 = int_to_ptr.vmem [resolvable:$true] %s194
          %200 = dma.hbm_to_vmem [thread:$0]  %s193, 1024, %s195, [#allocation3], 128, 128, 8
        $region16: #{tpu_custom_call.1} parent=11 // pred_fallthru
          _
        // Predicated region
        $region17: #{tpu_custom_call.1} parent=11 // pred_check
          %p201 = pneg %p102
        $region18: #{tpu_custom_call.1} parent=11 // pred_check_branch
          %203 = sbr.rel (%p201) target = $region20
        $region19: #{tpu_custom_call.1} parent=11 // pred_region
          %s204 = smul.u32 2, %s24
          %p205 = scmp.lt.s32.totalorder %s204, 1
          %s206 = scalar_select %p205, %s204, 1
          %s207 = smul.addr %s206, 8
          %s208 = scalar_lea.vmem %s2, %s207
          %s209 = smul.u32 2, %s24
        $region20: #{tpu_custom_call.1} parent=11 // pred_fallthru
          _
        // Predicated region
        $region21: #{tpu_custom_call.1} parent=11 // pred_check
          %p210 = pneg %p123
        $region22: #{tpu_custom_call.1} parent=11 // pred_check_branch
          %212 = sbr.rel (%p210) target = $region24
        $region23: #{tpu_custom_call.1} parent=11 // pred_region
          _
        $region24: #{tpu_custom_call.1} parent=11 // pred_fallthru
          _
        // Predicated region
        $region25: #{tpu_custom_call.1} parent=11 // pred_check
          %p213 = pneg %p144
        $region26: #{tpu_custom_call.1} parent=11 // pred_check_branch
          %215 = sbr.rel (%p213) target = $region28
        $region27: #{tpu_custom_call.1} parent=11 // pred_region
          _
        $region28: #{tpu_custom_call.1} parent=11 // pred_fallthru
          _
      $region12: #{tpu_custom_call.1} parent=5 // pred_fallthru
        _
      %p216 = scmp.lt.s32.totalorder %s15, 2
      // Predicated region
      $region29: #{tpu_custom_call.1} parent=5 // pred_check
        %p217 = pneg %p216
      $region30: #{tpu_custom_call.1} parent=5 // pred_check_branch
        %219 = sbr.rel (%p217) target = $region32
      $region31: #{tpu_custom_call.1} parent=5 // pred_region
        // Predicated region
        $region33: #{tpu_custom_call.1} parent=31 // pred_check
          %p220 = pneg %p49
        $region34: #{tpu_custom_call.1} parent=31 // pred_check_branch
          %222 = sbr.rel (%p220) target = $region36
        $region35: #{tpu_custom_call.1} parent=31 // pred_region
          %s223 = sadd.s32 %s23, %s22
          %s224 = smul.u32 2, %s223
          %p225 = scmp.lt.s32.totalorder %s224, 3
          %s226 = scalar_select %p225, %s224, 3
          %s227 = smul.addr %s226, 8
          %s228 = scalar_lea.vmem %s0, %s227
          %s229 = sadd.s32 %s23, %s22
          %s230 = smul.u32 2, %s229
        $region36: #{tpu_custom_call.1} parent=31 // pred_fallthru
          _
      $region32: #{tpu_custom_call.1} parent=5 // pred_fallthru
        _
      %p231 = scmp.le.s32.totalorder 1, %s15
      %p232 = scmp.lt.s32.totalorder %s15, 3
      %p233 = pnand %p231, %p232
      %p234 = pneg %p233
      // Predicated region
      $region37: #{tpu_custom_call.1} parent=5 // pred_check
        _
      $region38: #{tpu_custom_call.1} parent=5 // pred_check_branch
        %236 = sbr.rel (%p233) target = $region40
      $region39: #{tpu_custom_call.1} parent=5 // pred_region
        %s237 = ssub.s32 %s15, 1
        // Predicated region
        $region41: #{tpu_custom_call.1} parent=39 // pred_check
          %p238 = pneg %p76
        $region42: #{tpu_custom_call.1} parent=39 // pred_check_branch
          %240 = sbr.rel (%p238) target = $region44
        $region43: #{tpu_custom_call.1} parent=39 // pred_region
          %242 = dma.done [#allocation3], 1024
        $region44: #{tpu_custom_call.1} parent=39 // pred_fallthru
          _
        %s243 = sadd.s32 %s25, %s24
        %s244 = smul.u32 2, %s243
        %p245 = scmp.lt.s32.totalorder %s244, 3
        %s246 = scalar_select %p245, %s244, 3
        %s247 = smul.addr %s246, 8
        %s248 = scalar_lea.vmem %s0, %s247
        %p249 = pneg %p55
        %p250 = pneg %p52
        %p251 = pneg %p76
        %p252 = pneg %p73
        %s253 = smul.u32 2, %s24
        %p254 = scmp.lt.s32.totalorder %s253, 1
        %s255 = scalar_select %p254, %s253, 1
        %s256 = smul.addr %s255, 8
        %s257 = scalar_lea.vmem %s2, %s256
        %p258 = pneg %p102
        %p259 = pneg %p99
        %p260 = pneg %p123
        %p261 = pneg %p120
        %p262 = pneg %p144
        %p263 = pneg %p141
        %p264 = pneg %p172
        %p265 = pneg %p169
        %s266 = sand.u32 %s159, 1
        %s267 = scalar_lea.sflag [#allocation4], %s266
        %s268 = sand.u32 %s159, 1
        %s269 = smul.addr %s268, 16
        %s270 = scalar_lea.vmem [#allocation5], %s269
        %s271 = sadd.s32 %s25, %s24
        %s272 = smul.u32 2, %s271
        %p273 = scmp.lt.s32.totalorder %s272, 3
        %s274 = scalar_select %p273, %s272, 3
        %s275 = smul.addr %s274, 8
        %s276 = scalar_lea.vmem %s0, %s275
        %s277 = sadd.s32 %s25, %s24
        %s278 = smul.u32 2, %s277
        %s279 = smul.u32 2, %s24
        %p280 = scmp.lt.s32.totalorder %s279, 1
        %s281 = scalar_select %p280, %s279, 1
        %s282 = smul.addr %s281, 8
        %s283 = scalar_lea.vmem %s2, %s282
        %s284 = smul.u32 2, %s24
        %s285 = smul.u32 2, %s24
        %v286 = vld [vmem:[%s276] sm:$0xff]
        %v287 = vld [vmem:[%s276 + $0x8] sm:$0xff]
        %v288 = vlaneseq
        %v289 = vand.u32 %v288, 127
        %290 = vset.pattern.permute.xlu0 0
        %291 = vperm.xlu0 %290, %v286
        %v292 = vpop.permute.xlu0 %291
        %293 = vset.pattern.permute.xlu0 0
        %294 = vperm.xlu0 %293, %v287
        %v295 = vpop.permute.xlu0 %294
        %vm296 = vcmp.eq.s32.totalorder %v292, %v289
        %vm297 = vcmp.eq.s32.totalorder %v295, %v289
        %v298 = vsel %vm296, 1, 0
        %v299 = vsel %vm297, 1, 0
        %v300 = vcvt.s32.f32 %v298
        %v301 = vcvt.s32.f32 %v299
        %v302 = vld [vmem:[#allocation2] sm:$0xff]
        %v303 = vld [vmem:[#allocation2 + $0x8] sm:$0xff]
        %v304 = vld [vmem:[#allocation2 + $0x10] sm:$0xff]
        %v305 = vld [vmem:[#allocation2 + $0x18] sm:$0xff]
        %v306 = vld [vmem:[#allocation2 + $0x20] sm:$0xff]
        %v307 = vld [vmem:[#allocation2 + $0x28] sm:$0xff]
        %v308 = vld [vmem:[#allocation2 + $0x30] sm:$0xff]
        %v309 = vld [vmem:[#allocation2 + $0x38] sm:$0xff]
        %v310 = vld [vmem:[%s283] sm:$0xff]
        %v311 = vld [vmem:[%s283 + $0x8] sm:$0xff]
        %vm312 = vcmask 523264
        %v314 = vsel %vm312, %v300, 0
        %v317 = vsel %vm312, %v301, 0
        %319 = vmatpush.msra.mxu0 0.0
        %320 = vmatpush.msra.mxu0 0.0
        %321 = vmatpush.msra.mxu0 0.0
        %322 = vmatpush.msra.mxu0 0.0
        %323 = vmatpush.msra.mxu0 0.0
        %324 = vmatpush.msra.mxu0 0.0
        %325 = vmatpush.msra.mxu0 0.0
        %326 = vmatpush.msra.mxu0 0.0
        %v327 = vand.u32 %v309, 4294901760
        %328 = vmatpush.msra.mxu0 %v327
        %v329 = vand.u32 %v308, 4294901760
        %330 = vmatpush.msra.mxu0 %v329
        %v331 = vand.u32 %v307, 4294901760
        %332 = vmatpush.msra.mxu0 %v331
        %v333 = vand.u32 %v306, 4294901760
        %334 = vmatpush.msra.mxu0 %v333
        %v335 = vand.u32 %v305, 4294901760
        %336 = vmatpush.msra.mxu0 %v335
        %v337 = vand.u32 %v304, 4294901760
        %338 = vmatpush.msra.mxu0 %v337
        %v339 = vand.u32 %v303, 4294901760
        %340 = vmatpush.msra.mxu0 %v339
        %v341 = vand.u32 %v302, 4294901760
        %342 = vmatpush.msra.mxu0 %v341
        %v343 = vand.u32 %v314, 4294901760
        %v344 = vsub.f32 %v314, %v343
        %v345 = vand.u32 %v344, 4294901760
        %v346 = vsub.f32 %v344, %v345
        %v347 = vand.u32 %v346, 4294901760
        %348 = vmatmul.f32.gmra.mxu0 %v347
        %v349 = vpop.f32.mrf.mxu0
        %v350 = vadd.f32 %v310, %v349
        %v351 = vand.u32 %v317, 4294901760
        %v352 = vsub.f32 %v317, %v351
        %v353 = vand.u32 %v352, 4294901760
        %v354 = vsub.f32 %v352, %v353
        %v355 = vand.u32 %v354, 4294901760
        %356 = vmatmul.f32.gmra.mxu0 %v355
        %v357 = vpop.f32.mrf.mxu0
        %v358 = vadd.f32 %v311, %v357
        %359 = vdwg.mxu0
        %360 = vmatpush.msra.mxu0 0.0
        %361 = vmatpush.msra.mxu0 0.0
        %362 = vmatpush.msra.mxu0 0.0
        %363 = vmatpush.msra.mxu0 0.0
        %364 = vmatpush.msra.mxu0 0.0
        %365 = vmatpush.msra.mxu0 0.0
        %366 = vmatpush.msra.mxu0 0.0
        %367 = vmatpush.msra.mxu0 0.0
        %v368 = vand.u32 %v309, 4294901760
        %v369 = vsub.f32 %v309, %v368
        %v370 = vand.u32 %v369, 4294901760
        %v371 = vsub.f32 %v369, %v370
        %v372 = vand.u32 %v371, 4294901760
        %373 = vmatpush.msra.mxu0 %v372
        %v374 = vand.u32 %v308, 4294901760
        %v375 = vsub.f32 %v308, %v374
        %v376 = vand.u32 %v375, 4294901760
        %v377 = vsub.f32 %v375, %v376
        %v378 = vand.u32 %v377, 4294901760
        %379 = vmatpush.msra.mxu0 %v378
        %v380 = vand.u32 %v307, 4294901760
        %v381 = vsub.f32 %v307, %v380
        %v382 = vand.u32 %v381, 4294901760
        %v383 = vsub.f32 %v381, %v382
        %v384 = vand.u32 %v383, 4294901760
        %385 = vmatpush.msra.mxu0 %v384
        %v386 = vand.u32 %v306, 4294901760
        %v387 = vsub.f32 %v306, %v386
        %v388 = vand.u32 %v387, 4294901760
        %v389 = vsub.f32 %v387, %v388
        %v390 = vand.u32 %v389, 4294901760
        %391 = vmatpush.msra.mxu0 %v390
        %v392 = vand.u32 %v305, 4294901760
        %v393 = vsub.f32 %v305, %v392
        %v394 = vand.u32 %v393, 4294901760
        %v395 = vsub.f32 %v393, %v394
        %v396 = vand.u32 %v395, 4294901760
        %397 = vmatpush.msra.mxu0 %v396
        %v398 = vand.u32 %v304, 4294901760
        %v399 = vsub.f32 %v304, %v398
        %v400 = vand.u32 %v399, 4294901760
        %v401 = vsub.f32 %v399, %v400
        %v402 = vand.u32 %v401, 4294901760
        %403 = vmatpush.msra.mxu0 %v402
        %v404 = vand.u32 %v303, 4294901760
        %v405 = vsub.f32 %v303, %v404
        %v406 = vand.u32 %v405, 4294901760
        %v407 = vsub.f32 %v405, %v406
        %v408 = vand.u32 %v407, 4294901760
        %409 = vmatpush.msra.mxu0 %v408
        %v410 = vand.u32 %v302, 4294901760
        %v411 = vsub.f32 %v302, %v410
        %v412 = vand.u32 %v411, 4294901760
        %v413 = vsub.f32 %v411, %v412
        %v414 = vand.u32 %v413, 4294901760
        %415 = vmatpush.msra.mxu0 %v414
        %v416 = vand.u32 %v314, 4294901760
        %417 = vmatmul.f32.gmra.mxu0 %v416
        %v418 = vpop.f32.mrf.mxu0
        %v419 = vadd.f32 %v350, %v418
        %v420 = vand.u32 %v317, 4294901760
        %421 = vmatmul.f32.gmra.mxu0 %v420
        %v422 = vpop.f32.mrf.mxu0
        %v423 = vadd.f32 %v358, %v422
        %424 = vdwg.mxu0
        %425 = vmatpush.msra.mxu0 0.0
        %426 = vmatpush.msra.mxu0 0.0
        %427 = vmatpush.msra.mxu0 0.0
        %428 = vmatpush.msra.mxu0 0.0
        %429 = vmatpush.msra.mxu0 0.0
        %430 = vmatpush.msra.mxu0 0.0
        %431 = vmatpush.msra.mxu0 0.0
        %432 = vmatpush.msra.mxu0 0.0
        %v433 = vand.u32 %v309, 4294901760
        %v434 = vsub.f32 %v309, %v433
        %435 = vmatpush.msra.mxu0 %v434
        %v436 = vand.u32 %v308, 4294901760
        %v437 = vsub.f32 %v308, %v436
        %438 = vmatpush.msra.mxu0 %v437
        %v439 = vand.u32 %v307, 4294901760
        %v440 = vsub.f32 %v307, %v439
        %441 = vmatpush.msra.mxu0 %v440
        %v442 = vand.u32 %v306, 4294901760
        %v443 = vsub.f32 %v306, %v442
        %444 = vmatpush.msra.mxu0 %v443
        %v445 = vand.u32 %v305, 4294901760
        %v446 = vsub.f32 %v305, %v445
        %447 = vmatpush.msra.mxu0 %v446
        %v448 = vand.u32 %v304, 4294901760
        %v449 = vsub.f32 %v304, %v448
        %450 = vmatpush.msra.mxu0 %v449
        %v451 = vand.u32 %v303, 4294901760
        %v452 = vsub.f32 %v303, %v451
        %453 = vmatpush.msra.mxu0 %v452
        %v454 = vand.u32 %v302, 4294901760
        %v455 = vsub.f32 %v302, %v454
        %456 = vmatpush.msra.mxu0 %v455
        %v457 = vand.u32 %v314, 4294901760
        %v458 = vsub.f32 %v314, %v457
        %459 = vmatmul.f32.gmra.mxu0 %v458
        %v460 = vpop.f32.mrf.mxu0
        %v461 = vadd.f32 %v419, %v460
        %v462 = vand.u32 %v317, 4294901760
        %v463 = vsub.f32 %v317, %v462
        %464 = vmatmul.f32.gmra.mxu0 %v463
        %v465 = vpop.f32.mrf.mxu0
        %v466 = vadd.f32 %v423, %v465
        %467 = vdwg.mxu0
        %468 = vmatpush.msra.mxu0 0.0
        %469 = vmatpush.msra.mxu0 0.0
        %470 = vmatpush.msra.mxu0 0.0
        %471 = vmatpush.msra.mxu0 0.0
        %472 = vmatpush.msra.mxu0 0.0
        %473 = vmatpush.msra.mxu0 0.0
        %474 = vmatpush.msra.mxu0 0.0
        %475 = vmatpush.msra.mxu0 0.0
        %v476 = vand.u32 %v309, 4294901760
        %477 = vmatpush.msra.mxu0 %v476
        %v478 = vand.u32 %v308, 4294901760
        %479 = vmatpush.msra.mxu0 %v478
        %v480 = vand.u32 %v307, 4294901760
        %481 = vmatpush.msra.mxu0 %v480
        %v482 = vand.u32 %v306, 4294901760
        %483 = vmatpush.msra.mxu0 %v482
        %v484 = vand.u32 %v305, 4294901760
        %485 = vmatpush.msra.mxu0 %v484
        %v486 = vand.u32 %v304, 4294901760
        %487 = vmatpush.msra.mxu0 %v486
        %v488 = vand.u32 %v303, 4294901760
        %489 = vmatpush.msra.mxu0 %v488
        %v490 = vand.u32 %v302, 4294901760
        %491 = vmatpush.msra.mxu0 %v490
        %v492 = vand.u32 %v314, 4294901760
        %v493 = vsub.f32 %v314, %v492
        %v494 = vand.u32 %v493, 4294901760
        %495 = vmatmul.f32.gmra.mxu0 %v494
        %v496 = vpop.f32.mrf.mxu0
        %v497 = vadd.f32 %v461, %v496
        %v498 = vand.u32 %v317, 4294901760
        %v499 = vsub.f32 %v317, %v498
        %v500 = vand.u32 %v499, 4294901760
        %501 = vmatmul.f32.gmra.mxu0 %v500
        %v502 = vpop.f32.mrf.mxu0
        %v503 = vadd.f32 %v466, %v502
        %504 = vdwg.mxu0
        %505 = vmatpush.msra.mxu0 0.0
        %506 = vmatpush.msra.mxu0 0.0
        %507 = vmatpush.msra.mxu0 0.0
        %508 = vmatpush.msra.mxu0 0.0
        %509 = vmatpush.msra.mxu0 0.0
        %510 = vmatpush.msra.mxu0 0.0
        %511 = vmatpush.msra.mxu0 0.0
        %512 = vmatpush.msra.mxu0 0.0
        %v513 = vand.u32 %v309, 4294901760
        %v514 = vsub.f32 %v309, %v513
        %v515 = vand.u32 %v514, 4294901760
        %516 = vmatpush.msra.mxu0 %v515
        %v517 = vand.u32 %v308, 4294901760
        %v518 = vsub.f32 %v308, %v517
        %v519 = vand.u32 %v518, 4294901760
        %520 = vmatpush.msra.mxu0 %v519
        %v521 = vand.u32 %v307, 4294901760
        %v522 = vsub.f32 %v307, %v521
        %v523 = vand.u32 %v522, 4294901760
        %524 = vmatpush.msra.mxu0 %v523
        %v525 = vand.u32 %v306, 4294901760
        %v526 = vsub.f32 %v306, %v525
        %v527 = vand.u32 %v526, 4294901760
        %528 = vmatpush.msra.mxu0 %v527
        %v529 = vand.u32 %v305, 4294901760
        %v530 = vsub.f32 %v305, %v529
        %v531 = vand.u32 %v530, 4294901760
        %532 = vmatpush.msra.mxu0 %v531
        %v533 = vand.u32 %v304, 4294901760
        %v534 = vsub.f32 %v304, %v533
        %v535 = vand.u32 %v534, 4294901760
        %536 = vmatpush.msra.mxu0 %v535
        %v537 = vand.u32 %v303, 4294901760
        %v538 = vsub.f32 %v303, %v537
        %v539 = vand.u32 %v538, 4294901760
        %540 = vmatpush.msra.mxu0 %v539
        %v541 = vand.u32 %v302, 4294901760
        %v542 = vsub.f32 %v302, %v541
        %v543 = vand.u32 %v542, 4294901760
        %544 = vmatpush.msra.mxu0 %v543
        %v545 = vand.u32 %v314, 4294901760
        %546 = vmatmul.f32.gmra.mxu0 %v545
        %v547 = vpop.f32.mrf.mxu0
        %v548 = vadd.f32 %v497, %v547
        %v549 = vand.u32 %v317, 4294901760
        %550 = vmatmul.f32.gmra.mxu0 %v549
        %v551 = vpop.f32.mrf.mxu0
        %v552 = vadd.f32 %v503, %v551
        %553 = vdwg.mxu0
        %554 = vmatpush.msra.mxu0 0.0
        %555 = vmatpush.msra.mxu0 0.0
        %556 = vmatpush.msra.mxu0 0.0
        %557 = vmatpush.msra.mxu0 0.0
        %558 = vmatpush.msra.mxu0 0.0
        %559 = vmatpush.msra.mxu0 0.0
        %560 = vmatpush.msra.mxu0 0.0
        %561 = vmatpush.msra.mxu0 0.0
        %v562 = vand.u32 %v309, 4294901760
        %563 = vmatpush.msra.mxu0 %v562
        %v564 = vand.u32 %v308, 4294901760
        %565 = vmatpush.msra.mxu0 %v564
        %v566 = vand.u32 %v307, 4294901760
        %567 = vmatpush.msra.mxu0 %v566
        %v568 = vand.u32 %v306, 4294901760
        %569 = vmatpush.msra.mxu0 %v568
        %v570 = vand.u32 %v305, 4294901760
        %571 = vmatpush.msra.mxu0 %v570
        %v572 = vand.u32 %v304, 4294901760
        %573 = vmatpush.msra.mxu0 %v572
        %v574 = vand.u32 %v303, 4294901760
        %575 = vmatpush.msra.mxu0 %v574
        %v576 = vand.u32 %v302, 4294901760
        %577 = vmatpush.msra.mxu0 %v576
        %v578 = vand.u32 %v314, 4294901760
        %579 = vmatmul.f32.gmra.mxu0 %v578
        %v580 = vpop.f32.mrf.mxu0
        %v581 = vadd.f32 %v548, %v580
        %v582 = vand.u32 %v317, 4294901760
        %583 = vmatmul.f32.gmra.mxu0 %v582
        %v584 = vpop.f32.mrf.mxu0
        %v585 = vadd.f32 %v552, %v584
        %586 = vdwg.mxu0
        %v587 = vld [vmem:[%s3] sm:$0x1]
        %v588 = vld [vmem:[%s4] sm:$0x1]
        %589 = vadd.xlane.f32.xlu0 %v581
        %v590 = vpop.xlane.xlu0 %589
        %591 = vadd.xlane.f32.xlu0 %v585
        %v592 = vpop.xlane.xlu0 %591
        %v593 = vrcp.pop 128.0
        %v594 = vmul.f32 128.0, %v593
        %v595 = vsub.f32 1.0, %v594
        %v596 = vmul.f32 %v593, %v595
        %v597 = vadd.f32 %v593, %v596
        %vm598 = vweird.f32 %v593
        %v599 = vsel %vm598, %v593, %v597
        %v600 = vmul.f32 %v590, %v599
        %v601 = vmul.f32 %v592, %v599
        %v602 = vsub.f32 %v581, %v600
        %v603 = vsub.f32 %v585, %v601
        %v604 = vmul.f32 %v602, %v602
        %v605 = vmul.f32 %v603, %v603
        %606 = vadd.xlane.f32.xlu0 %v604
        %v607 = vpop.xlane.xlu0 %606
        %608 = vadd.xlane.f32.xlu0 %v605
        %v609 = vpop.xlane.xlu0 %608
        %v610 = vmul.f32 %v607, %v599
        %v611 = vmul.f32 %v609, %v599
        %v612 = vadd.f32 %v610, 1e-05
        %v613 = vadd.f32 %v611, 1e-05
        %v614 = vrsqrt.pop %v612
        %v615 = vmul.f32 %v614, %v612
        %v616 = vmul.f32 %v615, %v614
        %v617 = vmul.f32 0.5, %v616
        %v618 = vsub.f32 1.5, %v617
        %v619 = vmul.f32 %v614, %v618
        %vm620 = vweird.f32 %v612
        %vm621 = vweird.f32 %v614
        %vm622 = vmor %vm620, %vm621
        %v623 = vsel %vm622, %v614, %v619
        %v624 = vrsqrt.pop %v613
        %v625 = vmul.f32 %v624, %v613
        %v626 = vmul.f32 %v625, %v624
        %v627 = vmul.f32 0.5, %v626
        %v628 = vsub.f32 1.5, %v627
        %v629 = vmul.f32 %v624, %v628
        %vm630 = vweird.f32 %v613
        %vm631 = vweird.f32 %v624
        %vm632 = vmor %vm630, %vm631
        %v633 = vsel %vm632, %v624, %v629
        %v634 = vmul.f32 %v602, %v623
        %v635 = vmul.f32 %v603, %v633
        %v637 = vperm.slane %v587, 0
        %v639 = vmul.f32 %v634, %v637
        %v640 = vmul.f32 %v635, %v637
        %v642 = vperm.slane %v588, 0
        %v644 = vadd.f32 %v639, %v642
        %v645 = vadd.f32 %v640, %v642
        %646 = vst [vmem:[%s270] sm:$0xff] %v644
        %647 = vst [vmem:[%s270 + $0x8] sm:$0xff] %v645
        %s648 = sand.u32 %s159, 1
        %s649 = scalar_lea.sflag [#allocation4], %s648
        %s650 = sand.u32 %s159, 1
        %s651 = smul.addr %s650, 16
        %s652 = scalar_lea.vmem [#allocation5], %s651
        // Predicated region
        $region45: #{tpu_custom_call.1} parent=39 // pred_check
          %p653 = pneg %p169
        $region46: #{tpu_custom_call.1} parent=39 // pred_check_branch
          %655 = sbr.rel (%p653) target = $region48
        $region47: #{tpu_custom_call.1} parent=39 // pred_region
          %s656 = smul.u32 2, %s24
          %658 = vsyncadd %s649, 0
          %s659 = smul.addr %s25, 2
          %s660 = sadd.s32 %s656, %s659
          %s661 = smul.addr %s660, 8
          %s662 = scalar_lea.hbm %s5, %s661
          %s663 = sshll.u32 %s652, 4
          %s664 = int_to_ptr.vmem [resolvable:$true] %s663
          %s665 = sshll.u32 %s662, 4
          %s666 = int_to_ptr.hbm [resolvable:$true] %s665
          %671 = dma.vmem_to_hbm [thread:$0]  %s664, 256, %s666, %s649, 128, 128, 8
        $region48: #{tpu_custom_call.1} parent=39 // pred_fallthru
          _
      $region40: #{tpu_custom_call.1} parent=5 // pred_fallthru
        _
      %p672 = scmp.le.s32.totalorder 2, %s15
      // Predicated region
      $region49: #{tpu_custom_call.1} parent=5 // pred_check
        %p673 = pneg %p672
      $region50: #{tpu_custom_call.1} parent=5 // pred_check_branch
        %675 = sbr.rel (%p673) target = $region52
      $region51: #{tpu_custom_call.1} parent=5 // pred_region
        %s676 = ssub.s32 %s15, 2
        // Predicated region
        $region53: #{tpu_custom_call.1} parent=51 // pred_check
          %p677 = pneg %p175
        $region54: #{tpu_custom_call.1} parent=51 // pred_check_branch
          %679 = sbr.rel (%p677) target = $region56
        $region55: #{tpu_custom_call.1} parent=51 // pred_region
          %s680 = sand.u32 %s160, 1
          %s681 = scalar_lea.sflag [#allocation4], %s680
          %s682 = sand.u32 %s160, 1
          %s683 = smul.addr %s682, 16
          %s684 = scalar_lea.vmem [#allocation5], %s683
          %686 = dma.done %s681, 256
        $region56: #{tpu_custom_call.1} parent=51 // pred_fallthru
          _
      $region52: #{tpu_custom_call.1} parent=5 // pred_fallthru
        _
    $region6: #{tpu_custom_call.1} parent=1 // loop_footer
      %s19 = sadd.s32 1, %s15
    $region7: #{tpu_custom_call.1} parent=1 // loop_footer_branch
      %14 = sbr.rel target = $region3
    $region8: #{tpu_custom_call.1} parent=1 // loop_exit
      _
    %687 = vsyncpa [#allocation3], 1
    %s688 = scalar_lea.sflag [#allocation3], 1
    %689 = vsyncpa %s688, 1
    %690 = vsyncpa [#allocation4], 1
    %s691 = scalar_lea.sflag [#allocation4], 1
    %692 = vsyncpa %s691, 1

</llo_original>
